<compile_context>
chip_gen: v7x
topology: tpu7x:2x2x1
jax: 0.10.0
libtpu: 0.0.40
codegen_flags: <defaults>
</compile_context>

<pallas_src>
import math

import jax
import jax.numpy as jnp
from jax.experimental import pallas as pl
from jax.experimental.pallas import tpu as pltpu


def make_positional_encoding_table(d_model: int, max_len: int = 5000) -> jnp.ndarray:
    """Deterministic parameter setup mirroring PositionalEncoding.__init__.

    Returns pe with shape [max_len, 1, d_model] (float32), exactly like the
    registered buffer after `pe.unsqueeze(0).transpose(0, 1)`.
    Like the PyTorch reference, this requires an even d_model.
    """
    assert d_model % 2 == 0, "PositionalEncoding requires even d_model (same as the PyTorch reference)"
    position = jnp.arange(0, max_len, dtype=jnp.float32)[:, None]              # [max_len, 1]
    div_term = jnp.exp(
        jnp.arange(0, d_model, 2, dtype=jnp.float32) * (-math.log(10000.0) / d_model)
    )                                                                           # [d_model/2]
    angles = position * div_term                                                # [max_len, d_model/2]
    pe = jnp.zeros((max_len, d_model), dtype=jnp.float32)
    pe = pe.at[:, 0::2].set(jnp.sin(angles))
    pe = pe.at[:, 1::2].set(jnp.cos(angles))
    return pe[:, None, :]                                                       # [max_len, 1, d_model]


# --------------------------------------------------------------------------- #
# Kernels
# --------------------------------------------------------------------------- #
def _pe_add_bcast_kernel(x_ref, pe_ref, o_ref):
    # x_ref / o_ref : (TS, B, D) native-layout tiles (B on the sublane axis).
    # pe_ref        : (TS, 1, D) tile; broadcasts over the batch/sublane axis.
    # Cast after the add so bf16/f16 activations store in the output dtype.
    o_ref[...] = (x_ref[...] + pe_ref[...]).astype(o_ref.dtype)


def _pe_add_flat_kernel(x_ref, pe_ref, o_ref):
    # x_ref / o_ref : (TS, B*D) tiles (batch folded onto the lane axis).
    # pe_ref        : (TS, 1, D) tile.
    pe_tile = pe_ref[:, 0, :]                       # (TS, D), loaded once per tile
    d = pe_tile.shape[-1]
    nb = x_ref.shape[-1] // d                       # static small batch -> unrolled
    for b in range(nb):
        sl = slice(b * d, (b + 1) * d)              # 128-aligned lane slice (D % 128 == 0)
        o_ref[:, sl] = (x_ref[:, sl] + pe_tile).astype(o_ref.dtype)


# --------------------------------------------------------------------------- #
# Tiling helpers
# --------------------------------------------------------------------------- #
def _vmem_limit_bytes() -> int:
    """~3/4 of physical VMEM: ~96 MiB on v5e/v6e (128 MiB), ~48 MiB on v7x (64 MiB)."""
    try:
        cap = int(pltpu.get_tpu_info().vmem_capacity_bytes)
    except Exception:
        cap = 64 * 1024 * 1024  # conservative fallback: fits every generation
    return (cap * 3) // 4


def _choose_seq_tile(seq_len: int, resident_row_bytes: int, tile_row_bytes: int,
                     vmem_limit: int, min_steps: int = 1) -> int:
    """Pick an 8-aligned seq tile.

    resident_row_bytes: VMEM bytes per seq row across ALL resident pipeline
      buffers (2x x-in + 2x out + 2x PE, double-buffered by BlockSpec).
    tile_row_bytes: bytes per seq row of one x/out tile (per-tile cap).
    """
    # Fit all resident buffers in ~3/4 of the scoped limit (headroom for the rest).
    ts = (vmem_limit * 3 // 4) // max(resident_row_bytes, 1)
    # Per-tile cap near the streaming-add roofline plateau; generation aware:
    # ~8 MiB on v5e/v6e (96 MiB scoped budget), ~6 MiB on v7x (48 MiB budget).
    per_tile_cap = min(8 * 1024 * 1024, vmem_limit // 8)
    ts = min(ts, per_tile_cap // max(tile_row_bytes, 1))
    # Keep >= min_steps grid steps when the sequence allows it (DMA/compute
    # pipelining; lets v7x shard the parallel seq axis across its 2 TensorCores).
    if min_steps > 1 and seq_len >= 8 * min_steps:
        ts = min(ts, ((pl.cdiv(seq_len, min_steps) + 7) // 8) * 8)
    if ts >= seq_len:
        return seq_len                      # full extent: always a legal block dim
    return max(8, (ts // 8) * 8)            # (8, 128) block-divisibility rule


# --------------------------------------------------------------------------- #
# Forward
# --------------------------------------------------------------------------- #
def positional_encoding_forward(x: jnp.ndarray, pe: jnp.ndarray) -> jnp.ndarray:
    """Forward pass: x + pe[:x.shape[0], :].

    x : [S, B, D]   pe: [max_len, 1, D]  (max_len >= S)
    """
    S, B, D = x.shape
    assert pe.ndim == 3 and pe.shape[1] == 1 and pe.shape[2] == D and pe.shape[0] >= S

    isz = x.dtype.itemsize
    pe_isz = pe.dtype.itemsize
    vmem_limit = _vmem_limit_bytes()

    # Advisory cost: 1 add/elem, x read + x write + PE read.
    cost = pl.CostEstimate(
        flops=S * B * D,
        transcendentals=0,
        bytes_accessed=2 * S * B * D * isz + S * D * pe_isz,
    )

    use_flat = (B < 8) and (D % 128 == 0)

    if use_flat:
        # Small batch: fold (B, D) onto the lane axis.  This reshape merges
        # contiguous minor dims of a row-major array -> a bitcast, no HBM copy.
        x_in = x.reshape(S, B * D)
        kernel = _pe_add_flat_kernel
        x_row_bytes = B * D * isz
        def make_x_spec(ts):
            return pl.BlockSpec((ts, B * D), lambda i: (i, 0))
        out_shape = jax.ShapeDtypeStruct((S, B * D), x.dtype)
    else:
        # Native [S, B, D] block with the full batch on the sublane axis.
        x_in = x
        kernel = _pe_add_bcast_kernel
        b_pad = ((B + 7) // 8) * 8               # VMEM sublane padding when B % 8 != 0
        x_row_bytes = b_pad * D * isz
        def make_x_spec(ts):
            return pl.BlockSpec((ts, B, D), lambda i: (i, 0, 0))
        out_shape = jax.ShapeDtypeStruct((S, B, D), x.dtype)

    resident_row_bytes = 4 * x_row_bytes + 2 * D * pe_isz      # 2x(x) + 2x(out) + 2x(pe)
    TS = _choose_seq_tile(S, resident_row_bytes, x_row_bytes, vmem_limit, min_steps=4)
    grid = (pl.cdiv(S, TS),)

    # Feed the ORIGINAL pe buffer; only the needed (TS, 1, D) blocks are DMA'd.
    pe_spec = pl.BlockSpec((TS, 1, D), lambda i: (i, 0, 0))

    out = pl.pallas_call(
        kernel,
        out_shape=out_shape,
        grid_spec=pltpu.PrefetchScalarGridSpec(
            num_scalar_prefetch=0,
            grid=grid,
            in_specs=[make_x_spec(TS), pe_spec],
            out_specs=make_x_spec(TS),
        ),
        compiler_params=pltpu.CompilerParams(
            dimension_semantics=("parallel",),   # disjoint output blocks along seq
            vmem_limit_bytes=vmem_limit,
        ),
        cost_estimate=cost,
    )(x_in, pe)

    return out.reshape(S, B, D) if use_flat else out


# --------------------------------------------------------------------------- #
# Self-test
# --------------------------------------------------------------------------- #
if __name__ == "__main__":
    key = jax.random.PRNGKey(0)
    MAX_LEN = 64          # synthetic; module default is 5000
    D_MODEL = 128         # lane-dense last dim
    pe = make_positional_encoding_table(D_MODEL, MAX_LEN)

    # Case 1: small batch (lane-flattened path), f32.  [S, B, D] = [8, 2, 128]
    x1 = jax.random.normal(jax.random.fold_in(key, 0), (8, 2, D_MODEL), dtype=jnp.float32)
    out1 = positional_encoding_forward(x1, pe)
    jax.block_until_ready(out1)
    ref1 = x1 + pe[:8]
    assert out1.shape == x1.shape and out1.dtype == x1.dtype
    assert jnp.allclose(out1, ref1, atol=1e-6, rtol=1e-6)

    # Case 2: batch >= 8 (native [S,B,D] block, PE broadcast over sublanes), f32.
    x2 = jax.random.normal(jax.random.fold_in(key, 1), (16, 8, D_MODEL), dtype=jnp.float32)
    out2 = positional_encoding_forward(x2, pe)
    jax.block_until_ready(out2)
    ref2 = x2 + pe[:16]
    assert out2.shape == x2.shape and out2.dtype == x2.dtype
    assert jnp.allclose(out2, ref2, atol=1e-6, rtol=1e-6)

    # Case 3: bf16 activations with the f32 PE buffer (mixed-dtype store path).
    x3 = jax.random.normal(jax.random.fold_in(key, 2), (8, 2, D_MODEL), dtype=jnp.bfloat16)
    out3 = positional_encoding_forward(x3, pe)
    jax.block_until_ready(out3)
    ref3 = (x3 + pe[:8]).astype(jnp.bfloat16)
    assert out3.shape == x3.shape and out3.dtype == jnp.bfloat16
    assert jnp.allclose(out3.astype(jnp.float32), ref3.astype(jnp.float32), atol=1e-2, rtol=1e-2)

    print("KERNEL_OK")
</pallas_src>

<mosaic_0001>
module attributes {stable_mosaic.version = 11 : i64} {
  func.func @_pe_add_flat_kernel(%arg0: i32, %arg1: memref<8x256xf32, #tpu.memory_space<vmem>>, %arg2: memref<8x1x128xf32, #tpu.memory_space<vmem>>, %arg3: memref<8x256xf32, #tpu.memory_space<vmem>>) attributes {dimension_semantics = [#tpu.dimension_semantics<parallel>], iteration_bounds = array<i64: 1>, scalar_prefetch = 0 : i64, scratch_operands = 0 : i64, tpu.core_type = #tpu.core_type<tc>, window_params = [{transform_indices = @transform_0, window_bounds = array<i64: 8, 256>}, {transform_indices = @transform_1, window_bounds = array<i64: 8, 1, 128>}, {transform_indices = @transform_2, window_bounds = array<i64: 8, 256>}]} {
    %c0 = arith.constant 0 : index
    %c0_0 = arith.constant 0 : index
    %c0_1 = arith.constant 0 : index
    %0 = vector.load %arg2[%c0, %c0_0, %c0_1] : memref<8x1x128xf32, #tpu.memory_space<vmem>>, vector<8x1x128xf32>
    %1 = vector.shape_cast %0 : vector<8x1x128xf32> to vector<8x128xf32>
    %c0_2 = arith.constant 0 : index
    %c0_3 = arith.constant 0 : index
    %2 = vector.load %arg1[%c0_2, %c0_3] : memref<8x256xf32, #tpu.memory_space<vmem>>, vector<8x128xf32>
    %3 = arith.addf %2, %1 : vector<8x128xf32>
    %c0_4 = arith.constant 0 : index
    %c0_5 = arith.constant 0 : index
    %4 = vector.load %arg3[%c0_4, %c0_5] : memref<8x256xf32, #tpu.memory_space<vmem>>, vector<8x128xf32>
    tpu.vector_store %arg3[%c0_4, %c0_5], %3 {strides = array<i32>} : memref<8x256xf32, #tpu.memory_space<vmem>>, vector<8x128xf32>,
    %c0_6 = arith.constant 0 : index
    %c128 = arith.constant 128 : index
    %5 = vector.load %arg1[%c0_6, %c128] : memref<8x256xf32, #tpu.memory_space<vmem>>, vector<8x128xf32>
    %6 = arith.addf %5, %1 : vector<8x128xf32>
    %c0_7 = arith.constant 0 : index
    %c128_8 = arith.constant 128 : index
    %7 = vector.load %arg3[%c0_7, %c128_8] : memref<8x256xf32, #tpu.memory_space<vmem>>, vector<8x128xf32>
    tpu.vector_store %arg3[%c0_7, %c128_8], %6 {strides = array<i32>} : memref<8x256xf32, #tpu.memory_space<vmem>>, vector<8x128xf32>,
    return
  }
  func.func @transform_0(%arg0: i32) -> (i32, i32) {
    %c0_i32 = arith.constant 0 : i32
    %c0_i32_0 = arith.constant 0 : i32
    return %arg0, %c0_i32 : i32, i32
  }
  func.func @transform_1(%arg0: i32) -> (i32, i32, i32) {
    %c0_i32 = arith.constant 0 : i32
    %c0_i32_0 = arith.constant 0 : i32
    %c0_i32_1 = arith.constant 0 : i32
    return %arg0, %c0_i32, %c0_i32_0 : i32, i32, i32
  }
  func.func @transform_2(%arg0: i32) -> (i32, i32) {
    %c0_i32 = arith.constant 0 : i32
    %c0_i32_0 = arith.constant 0 : i32
    return %arg0, %c0_i32 : i32, i32
  }
}

</mosaic_0001>

<llo_original>
// kernel: tpu_custom_call.1
$region0: #{tpu_custom_call.1}
  #allocation0 [shape = 'u32[]', space=smem, size = 0x4, offset = 0x4, fixed_abs, tag = 'smem constant byte address 0x4 - core index']
  #allocation1 [shape = 'u32[144,128]{1,0:T(1,128)}', space=vmem, size = 0x12000, scoped, tag = 'internal scratch']
  %s0 = inlined_call_operand.hbm [shape: f32[8,256], index: 0, kind: input, shape index: {}]
  %s1 = inlined_call_operand.hbm [shape: f32[64,1,128], index: 1, kind: input, shape index: {}]
  %s2 = inlined_call_operand.hbm [shape: f32[8,256], index: 2, kind: output, shape index: {}]
  %s3 = sld [smem:[#allocation0]]
  $region26: #{tpu_custom_call.1} parent=0
    _
  %s5 = ssub.s32 1, %s3
  %s6 = scalar_select 0, %s5, %s3
  $region1: #{tpu_custom_call.1} parent=0
    #allocation2 [shape = 'u8[8192]{0}', space=vmem, size = 0x2000, scoped, tag = 'input window, operand 0, single buffered']
    #allocation3 [shape = 's32[1]{0}', space=sflag, size = 0x4, scoped, tag = 'scoped memory for tpu_custom_call.1']
    #allocation4 [shape = 's32[1]{0}', space=sflag, size = 0x4, scoped, tag = 'scoped memory for tpu_custom_call.1']
    #allocation5 [shape = 'u8[4096]{0}', space=vmem, size = 0x1000, scoped, tag = 'input window, operand 1, single buffered']
    #allocation6 [shape = 's32[1]{0}', space=sflag, size = 0x4, scoped, tag = 'scoped memory for tpu_custom_call.1']
    #allocation7 [shape = 'u8[8192]{0}', space=vmem, size = 0x2000, scoped, tag = 'output window, operand 0, single buffered']
    %7 = vsyncpa [#allocation3], 0
    %8 = vsyncpa [#allocation6], 0
    %9 = vsyncpa [#allocation4], 0
    // Predicated region
    $region2: #{tpu_custom_call.1} parent=1 // pred_check
      _
    $region3: #{tpu_custom_call.1} parent=1 // pred_check_branch
      %11 = sbr.rel (0) target = $region5
    $region4: #{tpu_custom_call.1} parent=1 // pred_region
      %s13 = ssub.s32 256, 256
      %14 = vsyncadd [#allocation3], %s13
      %s16 = sshll.u32 [#allocation2], 4
      %s17 = int_to_ptr.vmem [resolvable:$true] %s16
      %19 = dma.hbm_to_vmem [thread:$0]  %s0, 256, %s17, [#allocation3]
    $region5: #{tpu_custom_call.1} parent=1 // pred_fallthru
      _
    // Predicated region
    $region6: #{tpu_custom_call.1} parent=1 // pred_check
      _
    $region7: #{tpu_custom_call.1} parent=1 // pred_check_branch
      %21 = sbr.rel (0) target = $region9
    $region8: #{tpu_custom_call.1} parent=1 // pred_region
      %s23 = ssub.s32 128, 128
      %24 = vsyncadd [#allocation6], %s23
      %s25 = sshll.u32 [#allocation5], 4
      %s26 = int_to_ptr.vmem [resolvable:$true] %s25
      %31 = dma.hbm_to_vmem [thread:$0]  %s1, 128, %s26, [#allocation6], 16, 16, 1
    $region9: #{tpu_custom_call.1} parent=1 // pred_fallthru
      _
    // Predicated region
    $region10: #{tpu_custom_call.1} parent=1 // pred_check
      _
    $region11: #{tpu_custom_call.1} parent=1 // pred_check_branch
      %33 = sbr.rel (0) target = $region13
    $region12: #{tpu_custom_call.1} parent=1 // pred_region
      %34 = dma.done [#allocation3], 256
    $region13: #{tpu_custom_call.1} parent=1 // pred_fallthru
      _
    // Predicated region
    $region14: #{tpu_custom_call.1} parent=1 // pred_check
      _
    $region15: #{tpu_custom_call.1} parent=1 // pred_check_branch
      %36 = sbr.rel (0) target = $region17
    $region16: #{tpu_custom_call.1} parent=1 // pred_region
      %37 = dma.done [#allocation6], 128
    $region17: #{tpu_custom_call.1} parent=1 // pred_fallthru
      _
    %v38 = vld [vmem:[#allocation5] sm:$0x1]
    %v39 = vld [vmem:[#allocation5 + $0x1] sm:$0x1]
    %v40 = vld [vmem:[#allocation5 + $0x2] sm:$0x1]
    %v41 = vld [vmem:[#allocation5 + $0x3] sm:$0x1]
    %v42 = vld [vmem:[#allocation5 + $0x4] sm:$0x1]
    %v43 = vld [vmem:[#allocation5 + $0x5] sm:$0x1]
    %v44 = vld [vmem:[#allocation5 + $0x6] sm:$0x1]
    %v45 = vld [vmem:[#allocation5 + $0x7] sm:$0x1]
    %v46 = vld [vmem:[#allocation2] sm:$0xff]
    %v55 = vcombine.low %v38, %v39
    %v56 = vcombine.low %v40, %v41
    %v57 = vcombine.low %v42, %v43
    %v58 = vcombine.low %v44, %v45
    %v60 = vunpack.c.l.s4 1966171168
    %v61 = vunpack.c.0.s8 %v60
    %v62 = vlaneseq
    %v63 = vshrl.u32 %v62, 7
    %v64 = vsub.s32 %v61, %v63
    %v65 = vrot.slane %v55, %v64
    %v67 = vunpack.c.l.s4 1966171168
    %v68 = vunpack.c.0.s8 %v67
    %v69 = vlaneseq
    %v70 = vshrl.u32 %v69, 7
    %v71 = vsub.s32 %v68, %v70
    %v72 = vrot.slane %v56, %v71
    %v74 = vunpack.c.l.s4 1966171168
    %v75 = vunpack.c.0.s8 %v74
    %v76 = vlaneseq
    %v77 = vshrl.u32 %v76, 7
    %v78 = vsub.s32 %v75, %v77
    %v79 = vrot.slane %v57, %v78
    %v81 = vunpack.c.l.s4 1966171168
    %v82 = vunpack.c.0.s8 %v81
    %v83 = vlaneseq
    %v84 = vshrl.u32 %v83, 7
    %v85 = vsub.s32 %v82, %v84
    %v86 = vrot.slane %v58, %v85
    %v87 = vcombine.low %v65, %v72
    %v88 = vcombine.low %v79, %v86
    %v90 = vunpack.c.l.s4 1966171168
    %v91 = vunpack.c.0.s8 %v90
    %v92 = vlaneseq
    %v93 = vshrl.u32 %v92, 7
    %v94 = vsub.s32 %v91, %v93
    %v95 = vrot.slane %v87, %v94
    %v97 = vunpack.c.l.s4 1966171168
    %v98 = vunpack.c.0.s8 %v97
    %v99 = vlaneseq
    %v100 = vshrl.u32 %v99, 7
    %v101 = vsub.s32 %v98, %v100
    %v102 = vrot.slane %v88, %v101
    %v103 = vcombine.low %v95, %v102
    %v105 = vadd.f32 %v46, %v103
    %106 = vst [vmem:[#allocation7] sm:$0xff] %v105
    %v107 = vld [vmem:[#allocation2 + $0x8] sm:$0xff]
    %v108 = vadd.f32 %v107, %v103
    %109 = vst [vmem:[#allocation7 + $0x8] sm:$0xff] %v108
    // Predicated region
    $region18: #{tpu_custom_call.1} parent=1 // pred_check
      _
    $region19: #{tpu_custom_call.1} parent=1 // pred_check_branch
      %111 = sbr.rel (0) target = $region21
    $region20: #{tpu_custom_call.1} parent=1 // pred_region
      %s113 = ssub.s32 256, 256
      %114 = vsyncadd [#allocation4], %s113
      %s116 = sshll.u32 [#allocation7], 4
      %s117 = int_to_ptr.vmem [resolvable:$true] %s116
      %119 = dma.vmem_to_hbm [thread:$0]  %s117, 256, %s2, [#allocation4]
    $region21: #{tpu_custom_call.1} parent=1 // pred_fallthru
      _
    // Predicated region
    $region22: #{tpu_custom_call.1} parent=1 // pred_check
      _
    $region23: #{tpu_custom_call.1} parent=1 // pred_check_branch
      %121 = sbr.rel (0) target = $region25
    $region24: #{tpu_custom_call.1} parent=1 // pred_region
      %122 = dma.done [#allocation4], 256
    $region25: #{tpu_custom_call.1} parent=1 // pred_fallthru
      _
    %123 = vsyncpa [#allocation3], 1
    %124 = vsyncpa [#allocation6], 1
    %125 = vsyncpa [#allocation4], 1

</llo_original>
